<compile_context>
chip_gen: v7x
topology: tpu7x:2x2x1
jax: 0.10.0
libtpu: 0.0.40
codegen_flags: <defaults>
</compile_context>

<pallas_src>
import functools

import jax
import jax.numpy as jnp
from jax.experimental import pallas as pl
from jax.experimental.pallas import tpu as pltpu


def _gather_rows(tok_smem, emb_ref, out_ref, base, tn):
    """out[r, :] = emb[tok[base + r], :] for r in [0, tn). VMEM-local row copies."""
    def body(r, carry):
        t = tok_smem[base + r]
        out_ref[pl.ds(r, 1), :] = emb_ref[pl.ds(t, 1), :]
        return carry

    jax.lax.fori_loop(0, tn, body, 0, unroll=(tn <= 64))


def _gather_kernel(tok_smem, emb_ref, logits_ref, *, tn):
    i = pl.program_id(0)
    _gather_rows(tok_smem, emb_ref, logits_ref, i * tn, tn)


def _gather_xent_kernel(tok_smem, tgt_ref, emb_ref, logits_ref, loss_ref, *,
                        tn, n_valid, inv_n):
    i = pl.program_id(0)
    base = i * tn

    # Row gather for this tile (also produces the logits output tile).
    _gather_rows(tok_smem, emb_ref, logits_ref, base, tn)

    # Vectorized cross-entropy over the whole (tn, V) tile.
    rows = logits_ref[...]                                         # (tn, V) f32
    m = jnp.max(rows, axis=-1, keepdims=True)                      # (tn, 1)
    lse = m + jnp.log(jnp.sum(jnp.exp(rows - m), axis=-1, keepdims=True))
    col = jax.lax.broadcasted_iota(jnp.int32, rows.shape, 1)       # (tn, V)
    tgt = tgt_ref[...]                                             # (tn, 1) int32
    tgt_logit = jnp.sum(jnp.where(col == tgt, rows, 0.0),
                        axis=-1, keepdims=True)                    # (tn, 1)
    row_id = base + jax.lax.broadcasted_iota(jnp.int32, (tn, 1), 0)
    per_example = jnp.where(row_id < n_valid, lse - tgt_logit, 0.0)

    # Accumulate into the resident (1, 1) loss block.
    @pl.when(i == 0)
    def _():
        loss_ref[...] = jnp.zeros_like(loss_ref)

    loss_ref[...] += jnp.sum(per_example, keepdims=True)

    @pl.when(i == pl.num_programs(0) - 1)
    def _():
        loss_ref[...] = loss_ref[...] * jnp.float32(inv_n)

    # TODO(synk): no ignore_index handling (F.cross_entropy default semantics for
    # in-range targets only).


def _pad_rows(x, n_pad):
    n = x.shape[0]
    if n_pad == n:
        return x
    pad = jnp.zeros((n_pad - n,) + x.shape[1:], x.dtype)
    return jnp.concatenate([x, pad], axis=0)


def bigram_forward(emb_table, input_tokens, target_tokens=None, *, block_rows=256):
    """Mirrors BigramModule.forward.

    Returns (logits, loss):
      - target is None:  logits has shape (B, T, V), loss is None
      - target given:    logits has shape (B*T, V), loss is a scalar
    (Shape asymmetry is intentional — it matches the PyTorch module.)
    """
    B, T = input_tokens.shape
    V = emb_table.shape[0]
    N = B * T

    tn = min(block_rows, pl.cdiv(N, 8) * 8)       # rows per grid step (multiple of 8)
    n_pad = pl.cdiv(N, tn) * tn
    grid = (n_pad // tn,)

    tok = jnp.clip(input_tokens.reshape(N).astype(jnp.int32), 0, V - 1)
    tok = _pad_rows(tok, n_pad)                   # padded rows gather row 0 (masked later)
    emb = emb_table.astype(jnp.float32)

    if target_tokens is None:
        logits = pl.pallas_call(
            functools.partial(_gather_kernel, tn=tn),
            out_shape=jax.ShapeDtypeStruct((n_pad, V), jnp.float32),
            grid_spec=pltpu.PrefetchScalarGridSpec(
                num_scalar_prefetch=1,
                grid=grid,
                in_specs=[
                    pl.BlockSpec((V, V), lambda i, tok_ref: (0, 0)),   # table resident
                ],
                out_specs=pl.BlockSpec((tn, V), lambda i, tok_ref: (i, 0)),
            ),
            compiler_params=pltpu.CompilerParams(
                dimension_semantics=("parallel",)),
        )(tok, emb)
        return logits[:N].reshape(B, T, V), None

    tgt = jnp.clip(target_tokens.reshape(N).astype(jnp.int32), 0, V - 1)
    tgt = _pad_rows(tgt, n_pad).reshape(n_pad, 1)

    kernel = functools.partial(_gather_xent_kernel, tn=tn, n_valid=N,
                               inv_n=1.0 / float(N))
    logits, loss = pl.pallas_call(
        kernel,
        out_shape=(jax.ShapeDtypeStruct((n_pad, V), jnp.float32),
                   jax.ShapeDtypeStruct((1, 1), jnp.float32)),
        grid_spec=pltpu.PrefetchScalarGridSpec(
            num_scalar_prefetch=1,
            grid=grid,
            in_specs=[
                pl.BlockSpec((tn, 1), lambda i, tok_ref: (i, 0)),      # targets
                pl.BlockSpec((V, V), lambda i, tok_ref: (0, 0)),       # table resident
            ],
            out_specs=(
                pl.BlockSpec((tn, V), lambda i, tok_ref: (i, 0)),
                pl.BlockSpec((1, 1), lambda i, tok_ref: (0, 0)),       # resident loss acc
            ),
        ),
        compiler_params=pltpu.CompilerParams(
            dimension_semantics=("arbitrary",)),   # sequential loss accumulation
    )(tok, tgt, emb)
    return logits[:N].reshape(N, V), loss[0, 0]


def _reference_forward(emb_table, input_tokens, target_tokens):
    logits = emb_table[input_tokens]                      # (B, T, V)
    B, T, C = logits.shape
    flat = logits.reshape(B * T, C)
    tgt = target_tokens.reshape(B * T)
    lse = jax.scipy.special.logsumexp(flat, axis=-1)
    loss = jnp.mean(lse - flat[jnp.arange(B * T), tgt])
    return flat, loss


if __name__ == "__main__":
    B, T, V = 2, 8, 32  # batch, block_size, vocab size (Embedding(size, size))
    key = jax.random.PRNGKey(0)
    k_emb, k_in, k_tgt = jax.random.split(key, 3)

    # nn.Embedding initializes weights ~ N(0, 1); deterministic here.
    emb_table = jax.random.normal(k_emb, (V, V), dtype=jnp.float32)
    input_tokens = jax.random.randint(k_in, (B, T), 0, V, dtype=jnp.int32)
    target_tokens = jax.random.randint(k_tgt, (B, T), 0, V, dtype=jnp.int32)

    # With targets: (B*T, V) logits + scalar loss.
    logits, loss = bigram_forward(emb_table, input_tokens, target_tokens)
    logits = jax.block_until_ready(logits)
    loss = jax.block_until_ready(loss)

    # Without targets: (B, T, V) logits, loss is None.
    logits_nt, loss_nt = bigram_forward(emb_table, input_tokens, None)
    logits_nt = jax.block_until_ready(logits_nt)
    assert loss_nt is None

    ref_logits, ref_loss = _reference_forward(emb_table, input_tokens, target_tokens)
    assert logits.shape == (B * T, V)
    assert logits_nt.shape == (B, T, V)
    assert jnp.allclose(logits, ref_logits, atol=1e-5)
    assert jnp.allclose(logits_nt.reshape(B * T, V), ref_logits, atol=1e-5)
    assert jnp.allclose(loss, ref_loss, atol=1e-5)

    # TODO(synk): `generate` uses a torch.multinomial sampling loop; not part of
    # the forward hot path, so it is not implemented as a kernel.
    print("KERNEL_OK")
</pallas_src>

<mosaic_0001>
module attributes {stable_mosaic.version = 11 : i64} {
  func.func @_gather_xent_kernel(%arg0: i32, %arg1: memref<16xi32, #tpu.memory_space<smem>>, %arg2: memref<16x1xi32, #tpu.memory_space<vmem>>, %arg3: memref<32x32xf32, #tpu.memory_space<vmem>>, %arg4: memref<16x32xf32, #tpu.memory_space<vmem>>, %arg5: memref<1x1xf32, #tpu.memory_space<vmem>>) attributes {dimension_semantics = [#tpu.dimension_semantics<arbitrary>], iteration_bounds = array<i64: 1>, scalar_prefetch = 1 : i64, scratch_operands = 0 : i64, tpu.core_type = #tpu.core_type<tc>, window_params = [{transform_indices = @transform_0, window_bounds = array<i64: 16, 1>}, {pipeline_mode = #tpu.pipeline_mode<synchronous>, transform_indices = @transform_1, window_bounds = array<i64: 32, 32>}, {transform_indices = @transform_2, window_bounds = array<i64: 16, 32>}, {pipeline_mode = #tpu.pipeline_mode<synchronous>, transform_indices = @transform_3, window_bounds = array<i64: 1, 1>}]} {
    %c16_i32 = arith.constant 16 : i32
    %0 = arith.muli %arg0, %c16_i32 : i32
    %c0_i32 = arith.constant 0 : i32
    %1 = arith.addi %0, %c0_i32 : i32
    %2 = arith.index_cast %1 : i32 to index
    %3 = memref.load %arg1[%2] : memref<16xi32, #tpu.memory_space<smem>>
    %4 = arith.index_cast %3 : i32 to index
    %c0 = arith.constant 0 : index
    %5 = vector.load %arg3[%4, %c0] : memref<32x32xf32, #tpu.memory_space<vmem>>, vector<1x32xf32>
    %6 = arith.index_cast %c0_i32 : i32 to index
    %c0_0 = arith.constant 0 : index
    %7 = vector.load %arg4[%6, %c0_0] : memref<16x32xf32, #tpu.memory_space<vmem>>, vector<1x32xf32>
    tpu.vector_store %arg4[%6, %c0_0], %5 {strides = array<i32>} : memref<16x32xf32, #tpu.memory_space<vmem>>, vector<1x32xf32>,
    %c1_i32 = arith.constant 1 : i32
    %8 = arith.addi %0, %c1_i32 : i32
    %9 = arith.index_cast %8 : i32 to index
    %10 = memref.load %arg1[%9] : memref<16xi32, #tpu.memory_space<smem>>
    %11 = arith.index_cast %10 : i32 to index
    %c0_1 = arith.constant 0 : index
    %12 = vector.load %arg3[%11, %c0_1] : memref<32x32xf32, #tpu.memory_space<vmem>>, vector<1x32xf32>
    %13 = arith.index_cast %c1_i32 : i32 to index
    %c0_2 = arith.constant 0 : index
    %14 = vector.load %arg4[%13, %c0_2] : memref<16x32xf32, #tpu.memory_space<vmem>>, vector<1x32xf32>
    tpu.vector_store %arg4[%13, %c0_2], %12 {strides = array<i32>} : memref<16x32xf32, #tpu.memory_space<vmem>>, vector<1x32xf32>,
    %c2_i32 = arith.constant 2 : i32
    %15 = arith.addi %0, %c2_i32 : i32
    %16 = arith.index_cast %15 : i32 to index
    %17 = memref.load %arg1[%16] : memref<16xi32, #tpu.memory_space<smem>>
    %18 = arith.index_cast %17 : i32 to index
    %c0_3 = arith.constant 0 : index
    %19 = vector.load %arg3[%18, %c0_3] : memref<32x32xf32, #tpu.memory_space<vmem>>, vector<1x32xf32>
    %20 = arith.index_cast %c2_i32 : i32 to index
    %c0_4 = arith.constant 0 : index
    %21 = vector.load %arg4[%20, %c0_4] : memref<16x32xf32, #tpu.memory_space<vmem>>, vector<1x32xf32>
    tpu.vector_store %arg4[%20, %c0_4], %19 {strides = array<i32>} : memref<16x32xf32, #tpu.memory_space<vmem>>, vector<1x32xf32>,
    %c3_i32 = arith.constant 3 : i32
    %22 = arith.addi %0, %c3_i32 : i32
    %23 = arith.index_cast %22 : i32 to index
    %24 = memref.load %arg1[%23] : memref<16xi32, #tpu.memory_space<smem>>
    %25 = arith.index_cast %24 : i32 to index
    %c0_5 = arith.constant 0 : index
    %26 = vector.load %arg3[%25, %c0_5] : memref<32x32xf32, #tpu.memory_space<vmem>>, vector<1x32xf32>
    %27 = arith.index_cast %c3_i32 : i32 to index
    %c0_6 = arith.constant 0 : index
    %28 = vector.load %arg4[%27, %c0_6] : memref<16x32xf32, #tpu.memory_space<vmem>>, vector<1x32xf32>
    tpu.vector_store %arg4[%27, %c0_6], %26 {strides = array<i32>} : memref<16x32xf32, #tpu.memory_space<vmem>>, vector<1x32xf32>,
    %c4_i32 = arith.constant 4 : i32
    %29 = arith.addi %0, %c4_i32 : i32
    %30 = arith.index_cast %29 : i32 to index
    %31 = memref.load %arg1[%30] : memref<16xi32, #tpu.memory_space<smem>>
    %32 = arith.index_cast %31 : i32 to index
    %c0_7 = arith.constant 0 : index
    %33 = vector.load %arg3[%32, %c0_7] : memref<32x32xf32, #tpu.memory_space<vmem>>, vector<1x32xf32>
    %34 = arith.index_cast %c4_i32 : i32 to index
    %c0_8 = arith.constant 0 : index
    %35 = vector.load %arg4[%34, %c0_8] : memref<16x32xf32, #tpu.memory_space<vmem>>, vector<1x32xf32>
    tpu.vector_store %arg4[%34, %c0_8], %33 {strides = array<i32>} : memref<16x32xf32, #tpu.memory_space<vmem>>, vector<1x32xf32>,
    %c5_i32 = arith.constant 5 : i32
    %36 = arith.addi %0, %c5_i32 : i32
    %37 = arith.index_cast %36 : i32 to index
    %38 = memref.load %arg1[%37] : memref<16xi32, #tpu.memory_space<smem>>
    %39 = arith.index_cast %38 : i32 to index
    %c0_9 = arith.constant 0 : index
    %40 = vector.load %arg3[%39, %c0_9] : memref<32x32xf32, #tpu.memory_space<vmem>>, vector<1x32xf32>
    %41 = arith.index_cast %c5_i32 : i32 to index
    %c0_10 = arith.constant 0 : index
    %42 = vector.load %arg4[%41, %c0_10] : memref<16x32xf32, #tpu.memory_space<vmem>>, vector<1x32xf32>
    tpu.vector_store %arg4[%41, %c0_10], %40 {strides = array<i32>} : memref<16x32xf32, #tpu.memory_space<vmem>>, vector<1x32xf32>,
    %c6_i32 = arith.constant 6 : i32
    %43 = arith.addi %0, %c6_i32 : i32
    %44 = arith.index_cast %43 : i32 to index
    %45 = memref.load %arg1[%44] : memref<16xi32, #tpu.memory_space<smem>>
    %46 = arith.index_cast %45 : i32 to index
    %c0_11 = arith.constant 0 : index
    %47 = vector.load %arg3[%46, %c0_11] : memref<32x32xf32, #tpu.memory_space<vmem>>, vector<1x32xf32>
    %48 = arith.index_cast %c6_i32 : i32 to index
    %c0_12 = arith.constant 0 : index
    %49 = vector.load %arg4[%48, %c0_12] : memref<16x32xf32, #tpu.memory_space<vmem>>, vector<1x32xf32>
    tpu.vector_store %arg4[%48, %c0_12], %47 {strides = array<i32>} : memref<16x32xf32, #tpu.memory_space<vmem>>, vector<1x32xf32>,
    %c7_i32 = arith.constant 7 : i32
    %50 = arith.addi %0, %c7_i32 : i32
    %51 = arith.index_cast %50 : i32 to index
    %52 = memref.load %arg1[%51] : memref<16xi32, #tpu.memory_space<smem>>
    %53 = arith.index_cast %52 : i32 to index
    %c0_13 = arith.constant 0 : index
    %54 = vector.load %arg3[%53, %c0_13] : memref<32x32xf32, #tpu.memory_space<vmem>>, vector<1x32xf32>
    %55 = arith.index_cast %c7_i32 : i32 to index
    %c0_14 = arith.constant 0 : index
    %56 = vector.load %arg4[%55, %c0_14] : memref<16x32xf32, #tpu.memory_space<vmem>>, vector<1x32xf32>
    tpu.vector_store %arg4[%55, %c0_14], %54 {strides = array<i32>} : memref<16x32xf32, #tpu.memory_space<vmem>>, vector<1x32xf32>,
    %c8_i32 = arith.constant 8 : i32
    %57 = arith.addi %0, %c8_i32 : i32
    %58 = arith.index_cast %57 : i32 to index
    %59 = memref.load %arg1[%58] : memref<16xi32, #tpu.memory_space<smem>>
    %60 = arith.index_cast %59 : i32 to index
    %c0_15 = arith.constant 0 : index
    %61 = vector.load %arg3[%60, %c0_15] : memref<32x32xf32, #tpu.memory_space<vmem>>, vector<1x32xf32>
    %62 = arith.index_cast %c8_i32 : i32 to index
    %c0_16 = arith.constant 0 : index
    %63 = vector.load %arg4[%62, %c0_16] : memref<16x32xf32, #tpu.memory_space<vmem>>, vector<1x32xf32>
    tpu.vector_store %arg4[%62, %c0_16], %61 {strides = array<i32>} : memref<16x32xf32, #tpu.memory_space<vmem>>, vector<1x32xf32>,
    %c9_i32 = arith.constant 9 : i32
    %64 = arith.addi %0, %c9_i32 : i32
    %65 = arith.index_cast %64 : i32 to index
    %66 = memref.load %arg1[%65] : memref<16xi32, #tpu.memory_space<smem>>
    %67 = arith.index_cast %66 : i32 to index
    %c0_17 = arith.constant 0 : index
    %68 = vector.load %arg3[%67, %c0_17] : memref<32x32xf32, #tpu.memory_space<vmem>>, vector<1x32xf32>
    %69 = arith.index_cast %c9_i32 : i32 to index
    %c0_18 = arith.constant 0 : index
    %70 = vector.load %arg4[%69, %c0_18] : memref<16x32xf32, #tpu.memory_space<vmem>>, vector<1x32xf32>
    tpu.vector_store %arg4[%69, %c0_18], %68 {strides = array<i32>} : memref<16x32xf32, #tpu.memory_space<vmem>>, vector<1x32xf32>,
    %c10_i32 = arith.constant 10 : i32
    %71 = arith.addi %0, %c10_i32 : i32
    %72 = arith.index_cast %71 : i32 to index
    %73 = memref.load %arg1[%72] : memref<16xi32, #tpu.memory_space<smem>>
    %74 = arith.index_cast %73 : i32 to index
    %c0_19 = arith.constant 0 : index
    %75 = vector.load %arg3[%74, %c0_19] : memref<32x32xf32, #tpu.memory_space<vmem>>, vector<1x32xf32>
    %76 = arith.index_cast %c10_i32 : i32 to index
    %c0_20 = arith.constant 0 : index
    %77 = vector.load %arg4[%76, %c0_20] : memref<16x32xf32, #tpu.memory_space<vmem>>, vector<1x32xf32>
    tpu.vector_store %arg4[%76, %c0_20], %75 {strides = array<i32>} : memref<16x32xf32, #tpu.memory_space<vmem>>, vector<1x32xf32>,
    %c11_i32 = arith.constant 11 : i32
    %78 = arith.addi %0, %c11_i32 : i32
    %79 = arith.index_cast %78 : i32 to index
    %80 = memref.load %arg1[%79] : memref<16xi32, #tpu.memory_space<smem>>
    %81 = arith.index_cast %80 : i32 to index
    %c0_21 = arith.constant 0 : index
    %82 = vector.load %arg3[%81, %c0_21] : memref<32x32xf32, #tpu.memory_space<vmem>>, vector<1x32xf32>
    %83 = arith.index_cast %c11_i32 : i32 to index
    %c0_22 = arith.constant 0 : index
    %84 = vector.load %arg4[%83, %c0_22] : memref<16x32xf32, #tpu.memory_space<vmem>>, vector<1x32xf32>
    tpu.vector_store %arg4[%83, %c0_22], %82 {strides = array<i32>} : memref<16x32xf32, #tpu.memory_space<vmem>>, vector<1x32xf32>,
    %c12_i32 = arith.constant 12 : i32
    %85 = arith.addi %0, %c12_i32 : i32
    %86 = arith.index_cast %85 : i32 to index
    %87 = memref.load %arg1[%86] : memref<16xi32, #tpu.memory_space<smem>>
    %88 = arith.index_cast %87 : i32 to index
    %c0_23 = arith.constant 0 : index
    %89 = vector.load %arg3[%88, %c0_23] : memref<32x32xf32, #tpu.memory_space<vmem>>, vector<1x32xf32>
    %90 = arith.index_cast %c12_i32 : i32 to index
    %c0_24 = arith.constant 0 : index
    %91 = vector.load %arg4[%90, %c0_24] : memref<16x32xf32, #tpu.memory_space<vmem>>, vector<1x32xf32>
    tpu.vector_store %arg4[%90, %c0_24], %89 {strides = array<i32>} : memref<16x32xf32, #tpu.memory_space<vmem>>, vector<1x32xf32>,
    %c13_i32 = arith.constant 13 : i32
    %92 = arith.addi %0, %c13_i32 : i32
    %93 = arith.index_cast %92 : i32 to index
    %94 = memref.load %arg1[%93] : memref<16xi32, #tpu.memory_space<smem>>
    %95 = arith.index_cast %94 : i32 to index
    %c0_25 = arith.constant 0 : index
    %96 = vector.load %arg3[%95, %c0_25] : memref<32x32xf32, #tpu.memory_space<vmem>>, vector<1x32xf32>
    %97 = arith.index_cast %c13_i32 : i32 to index
    %c0_26 = arith.constant 0 : index
    %98 = vector.load %arg4[%97, %c0_26] : memref<16x32xf32, #tpu.memory_space<vmem>>, vector<1x32xf32>
    tpu.vector_store %arg4[%97, %c0_26], %96 {strides = array<i32>} : memref<16x32xf32, #tpu.memory_space<vmem>>, vector<1x32xf32>,
    %c14_i32 = arith.constant 14 : i32
    %99 = arith.addi %0, %c14_i32 : i32
    %100 = arith.index_cast %99 : i32 to index
    %101 = memref.load %arg1[%100] : memref<16xi32, #tpu.memory_space<smem>>
    %102 = arith.index_cast %101 : i32 to index
    %c0_27 = arith.constant 0 : index
    %103 = vector.load %arg3[%102, %c0_27] : memref<32x32xf32, #tpu.memory_space<vmem>>, vector<1x32xf32>
    %104 = arith.index_cast %c14_i32 : i32 to index
    %c0_28 = arith.constant 0 : index
    %105 = vector.load %arg4[%104, %c0_28] : memref<16x32xf32, #tpu.memory_space<vmem>>, vector<1x32xf32>
    tpu.vector_store %arg4[%104, %c0_28], %103 {strides = array<i32>} : memref<16x32xf32, #tpu.memory_space<vmem>>, vector<1x32xf32>,
    %c15_i32 = arith.constant 15 : i32
    %106 = arith.addi %0, %c15_i32 : i32
    %107 = arith.index_cast %106 : i32 to index
    %108 = memref.load %arg1[%107] : memref<16xi32, #tpu.memory_space<smem>>
    %109 = arith.index_cast %108 : i32 to index
    %c0_29 = arith.constant 0 : index
    %110 = vector.load %arg3[%109, %c0_29] : memref<32x32xf32, #tpu.memory_space<vmem>>, vector<1x32xf32>
    %111 = arith.index_cast %c15_i32 : i32 to index
    %c0_30 = arith.constant 0 : index
    %112 = vector.load %arg4[%111, %c0_30] : memref<16x32xf32, #tpu.memory_space<vmem>>, vector<1x32xf32>
    tpu.vector_store %arg4[%111, %c0_30], %110 {strides = array<i32>} : memref<16x32xf32, #tpu.memory_space<vmem>>, vector<1x32xf32>,
    %c16_i32_31 = arith.constant 16 : i32
    %c0_32 = arith.constant 0 : index
    %c0_33 = arith.constant 0 : index
    %113 = vector.load %arg4[%c0_32, %c0_33] : memref<16x32xf32, #tpu.memory_space<vmem>>, vector<16x32xf32>
    %cst = arith.constant dense<0xFF800000> : vector<16xf32>
    %114 = vector.multi_reduction <maximumf>, %113, %cst [1] : vector<16x32xf32> to vector<16xf32>
    %115 = vector.shape_cast %114 : vector<16xf32> to vector<16x1xf32>
    %116 = vector.broadcast %115 : vector<16x1xf32> to vector<16x32xf32>
    %117 = arith.subf %113, %116 : vector<16x32xf32>
    %118 = math.exp %117 : vector<16x32xf32>
    %cst_34 = arith.constant dense<0.000000e+00> : vector<16xf32>
    %119 = vector.multi_reduction <add>, %118, %cst_34 [1] : vector<16x32xf32> to vector<16xf32>
    %120 = vector.shape_cast %119 : vector<16xf32> to vector<16x1xf32>
    %121 = math.log %120 : vector<16x1xf32>
    %122 = arith.addf %115, %121 : vector<16x1xf32>
    %123 = tpu.iota {dimensions = array<i32: 1>} : vector<16x32xi32>
    %c0_35 = arith.constant 0 : index
    %c0_36 = arith.constant 0 : index
    %124 = vector.load %arg2[%c0_35, %c0_36] : memref<16x1xi32, #tpu.memory_space<vmem>>, vector<16x1xi32>
    %125 = vector.broadcast %124 : vector<16x1xi32> to vector<16x32xi32>
    %126 = arith.cmpi eq, %123, %125 : vector<16x32xi32>
    %cst_37 = arith.constant 0.000000e+00 : f32
    %127 = vector.broadcast %cst_37 : f32 to vector<16x32xf32>
    %128 = arith.select %126, %113, %127 : vector<16x32xi1>, vector<16x32xf32>
    %cst_38 = arith.constant dense<0.000000e+00> : vector<16xf32>
    %129 = vector.multi_reduction <add>, %128, %cst_38 [1] : vector<16x32xf32> to vector<16xf32>
    %130 = vector.shape_cast %129 : vector<16xf32> to vector<16x1xf32>
    %131 = tpu.iota {dimensions = array<i32: 0>} : vector<16x1xi32>
    %132 = vector.broadcast %0 : i32 to vector<16x1xi32>
    %133 = arith.addi %132, %131 : vector<16x1xi32>
    %c16_i32_39 = arith.constant 16 : i32
    %134 = vector.broadcast %c16_i32_39 : i32 to vector<16x1xi32>
    %135 = arith.cmpi slt, %133, %134 : vector<16x1xi32>
    %136 = arith.subf %122, %130 : vector<16x1xf32>
    %cst_40 = arith.constant 0.000000e+00 : f32
    %137 = vector.broadcast %cst_40 : f32 to vector<16x1xf32>
    %138 = arith.select %135, %136, %137 : vector<16x1xi1>, vector<16x1xf32>
    %c0_i32_41 = arith.constant 0 : i32
    %139 = arith.cmpi eq, %arg0, %c0_i32_41 : i32
    %140 = arith.extui %139 : i1 to i32
    %c0_i32_42 = arith.constant 0 : i32
    %141 = arith.cmpi ne, %140, %c0_i32_42 : i32
    scf.if %141 {
      %cst_50 = arith.constant 0.000000e+00 : f32
      %153 = vector.broadcast %cst_50 : f32 to vector<1x1xf32>
      %c0_51 = arith.constant 0 : index
      %c0_52 = arith.constant 0 : index
      %154 = vector.load %arg5[%c0_51, %c0_52] : memref<1x1xf32, #tpu.memory_space<vmem>>, vector<1x1xf32>
      tpu.vector_store %arg5[%c0_51, %c0_52], %153 {strides = array<i32>} : memref<1x1xf32, #tpu.memory_space<vmem>>, vector<1x1xf32>,
    } else {
    }
    %c0_43 = arith.constant 0 : index
    %c0_44 = arith.constant 0 : index
    %142 = vector.load %arg5[%c0_43, %c0_44] : memref<1x1xf32, #tpu.memory_space<vmem>>, vector<1x1xf32>
    %143 = vector.shape_cast %138 : vector<16x1xf32> to vector<1x16x1xf32>
    %cst_45 = arith.constant dense<0.000000e+00> : vector<1xf32>
    %144 = vector.multi_reduction <add>, %143, %cst_45 [1, 2] : vector<1x16x1xf32> to vector<1xf32>
    %145 = vector.shape_cast %144 : vector<1xf32> to vector<1x1x1xf32>
    %146 = vector.extract %145[0, 0, 0] : f32 from vector<1x1x1xf32>
    %147 = vector.broadcast %146 : f32 to vector<1x1xf32>
    %148 = arith.addf %142, %147 : vector<1x1xf32>
    %c0_46 = arith.constant 0 : index
    %c0_47 = arith.constant 0 : index
    %149 = vector.load %arg5[%c0_46, %c0_47] : memref<1x1xf32, #tpu.memory_space<vmem>>, vector<1x1xf32>
    tpu.vector_store %arg5[%c0_46, %c0_47], %148 {strides = array<i32>} : memref<1x1xf32, #tpu.memory_space<vmem>>, vector<1x1xf32>,
    %c0_i32_48 = arith.constant 0 : i32
    %150 = arith.cmpi eq, %arg0, %c0_i32_48 : i32
    %151 = arith.extui %150 : i1 to i32
    %c0_i32_49 = arith.constant 0 : i32
    %152 = arith.cmpi ne, %151, %c0_i32_49 : i32
    scf.if %152 {
      %c0_50 = arith.constant 0 : index
      %c0_51 = arith.constant 0 : index
      %153 = vector.load %arg5[%c0_50, %c0_51] : memref<1x1xf32, #tpu.memory_space<vmem>>, vector<1x1xf32>
      %cst_52 = arith.constant 6.250000e-02 : f32
      %154 = vector.broadcast %cst_52 : f32 to vector<1x1xf32>
      %155 = arith.mulf %153, %154 : vector<1x1xf32>
      %c0_53 = arith.constant 0 : index
      %c0_54 = arith.constant 0 : index
      %156 = vector.load %arg5[%c0_53, %c0_54] : memref<1x1xf32, #tpu.memory_space<vmem>>, vector<1x1xf32>
      tpu.vector_store %arg5[%c0_53, %c0_54], %155 {strides = array<i32>} : memref<1x1xf32, #tpu.memory_space<vmem>>, vector<1x1xf32>,
    } else {
    }
    return
  }
  func.func @transform_0(%arg0: i32, %arg1: memref<16xi32, #tpu.memory_space<smem>>) -> (i32, i32) {
    %c0_i32 = arith.constant 0 : i32
    %c0_i32_0 = arith.constant 0 : i32
    return %arg0, %c0_i32 : i32, i32
  }
  func.func @transform_1(%arg0: i32, %arg1: memref<16xi32, #tpu.memory_space<smem>>) -> (i32, i32) {
    %c0_i32 = arith.constant 0 : i32
    %c0_i32_0 = arith.constant 0 : i32
    %c0_i32_1 = arith.constant 0 : i32
    return %c0_i32, %c0_i32_0 : i32, i32
  }
  func.func @transform_2(%arg0: i32, %arg1: memref<16xi32, #tpu.memory_space<smem>>) -> (i32, i32) {
    %c0_i32 = arith.constant 0 : i32
    %c0_i32_0 = arith.constant 0 : i32
    return %arg0, %c0_i32 : i32, i32
  }
  func.func @transform_3(%arg0: i32, %arg1: memref<16xi32, #tpu.memory_space<smem>>) -> (i32, i32) {
    %c0_i32 = arith.constant 0 : i32
    %c0_i32_0 = arith.constant 0 : i32
    %c0_i32_1 = arith.constant 0 : i32
    return %c0_i32, %c0_i32_0 : i32, i32
  }
}

</mosaic_0001>

<llo_original>
// kernel: tpu_custom_call.1
$region0: #{tpu_custom_call.1}
  #allocation0 [shape = 'u32[]', space=smem, size = 0x4, offset = 0x4, fixed_abs, tag = 'smem constant byte address 0x4 - core index']
  #allocation1 [shape = 'u32[144,128]{1,0:T(1,128)}', space=vmem, size = 0x12000, scoped, tag = 'internal scratch']
  #allocation2 [shape = 's32[1]{0}', space=sflag, size = 0x4, scoped, tag = 'scoped memory for tpu_custom_call.1']
  #allocation3 [shape = 'u8[512]{0}', space=smem, size = 0x200, scoped, tag = 'prefetched SMEM operand 0']
  %s0 = inlined_call_operand.vmem [shape: s32[16], index: 0, kind: input, shape index: {}]
  %s1 = inlined_call_operand.vmem [shape: s32[16,1], index: 1, kind: input, shape index: {}]
  %s2 = inlined_call_operand.hbm [shape: f32[32,32], index: 2, kind: input, shape index: {}]
  %s3 = inlined_call_operand.hbm [shape: f32[16,32], index: 3, kind: output, shape index: {0}]
  %s4 = inlined_call_operand.hbm [shape: f32[1,1], index: 4, kind: output, shape index: {1}]
  %5 = xla_tuple %s3, %s4
  %s6 = sld [smem:[#allocation0]]
  $region38: #{tpu_custom_call.1} parent=0
    _
  %s8 = ssub.s32 1, %s6
  %s9 = scalar_select 0, %s8, %s6
  %s10 = sshll.u32 %s0, 4
  %s11 = int_to_ptr.vmem [resolvable:$true] %s10
  %13 = dma.vmem_to_smem %s11, 16, [#allocation3], [#allocation2]
  %14 = dma.done [#allocation2], 16
  %15 = sfence
  $region1: #{tpu_custom_call.1} parent=0
    #allocation4 [shape = 'u8[16384]{0}', space=vmem, size = 0x4000, scoped, tag = 'input window, operand 2, single buffered']
    #allocation5 [shape = 's32[1]{0}', space=sflag, size = 0x4, scoped, tag = 'scoped memory for tpu_custom_call.1']
    #allocation6 [shape = 's32[1]{0}', space=sflag, size = 0x4, scoped, tag = 'scoped memory for tpu_custom_call.1']
    #allocation7 [shape = 'u8[8192]{0}', space=vmem, size = 0x2000, scoped, tag = 'output window, operand 0, single buffered']
    #allocation8 [shape = 'u8[512]{0}', space=vmem, size = 0x400, scoped, tag = 'output window, operand 1, single buffered']
    #allocation9 [shape = 's32[1]{0}', space=sflag, size = 0x4, scoped, tag = 'scoped memory for tpu_custom_call.1']
    %16 = vsyncpa [#allocation5], 0
    %17 = vsyncpa [#allocation6], 0
    %18 = vsyncpa [#allocation9], 0
    // Predicated region
    $region2: #{tpu_custom_call.1} parent=1 // pred_check
      _
    $region3: #{tpu_custom_call.1} parent=1 // pred_check_branch
      %20 = sbr.rel (0) target = $region5
    $region4: #{tpu_custom_call.1} parent=1 // pred_region
      _
    $region5: #{tpu_custom_call.1} parent=1 // pred_fallthru
      _
    // Predicated region
    $region6: #{tpu_custom_call.1} parent=1 // pred_check
      _
    $region7: #{tpu_custom_call.1} parent=1 // pred_check_branch
      %22 = sbr.rel (0) target = $region9
    $region8: #{tpu_custom_call.1} parent=1 // pred_region
      %s24 = ssub.s32 512, 512
      %25 = vsyncadd [#allocation5], %s24
      %s26 = sshll.u32 [#allocation4], 4
      %s27 = int_to_ptr.vmem [resolvable:$true] %s26
      %32 = dma.hbm_to_vmem [thread:$0]  %s2, 512, %s27, [#allocation5], 128, 128, 8
    $region9: #{tpu_custom_call.1} parent=1 // pred_fallthru
      _
    // Predicated region
    $region10: #{tpu_custom_call.1} parent=1 // pred_check
      _
    $region11: #{tpu_custom_call.1} parent=1 // pred_check_branch
      %34 = sbr.rel (0) target = $region13
    $region12: #{tpu_custom_call.1} parent=1 // pred_region
      %35 = dma.done [#allocation5], 512
    $region13: #{tpu_custom_call.1} parent=1 // pred_fallthru
      _
    %s36 = smul.u32 0, 16
    %s37 = sld [smem:[#allocation3 + %s36]]
    %s38 = scalar_lea.vmem [#allocation4], %s37
    %v39 = vld [vmem:[%s38] sm:$0x1]
    %vm40 = vcmask 253952
    %41 = vst.msk [vmem:[#allocation7] sm:$0x1] %vm40, %v39
    %s42 = sadd.s32 %s36, 1
    %s43 = sld [smem:[#allocation3 + %s42]]
    %s44 = scalar_lea.vmem [#allocation4], %s43
    %v45 = vld [vmem:[%s44] sm:$0x1]
    %46 = vst.msk [vmem:[#allocation7 + $0x1] sm:$0x1] %vm40, %v45
    %s47 = sadd.s32 %s36, 2
    %s48 = sld [smem:[#allocation3 + %s47]]
    %s49 = scalar_lea.vmem [#allocation4], %s48
    %v50 = vld [vmem:[%s49] sm:$0x1]
    %51 = vst.msk [vmem:[#allocation7 + $0x2] sm:$0x1] %vm40, %v50
    %s52 = sadd.s32 %s36, 3
    %s53 = sld [smem:[#allocation3 + %s52]]
    %s54 = scalar_lea.vmem [#allocation4], %s53
    %v55 = vld [vmem:[%s54] sm:$0x1]
    %56 = vst.msk [vmem:[#allocation7 + $0x3] sm:$0x1] %vm40, %v55
    %s57 = sadd.s32 %s36, 4
    %s58 = sld [smem:[#allocation3 + %s57]]
    %s59 = scalar_lea.vmem [#allocation4], %s58
    %v60 = vld [vmem:[%s59] sm:$0x1]
    %61 = vst.msk [vmem:[#allocation7 + $0x4] sm:$0x1] %vm40, %v60
    %s62 = sadd.s32 %s36, 5
    %s63 = sld [smem:[#allocation3 + %s62]]
    %s64 = scalar_lea.vmem [#allocation4], %s63
    %v65 = vld [vmem:[%s64] sm:$0x1]
    %66 = vst.msk [vmem:[#allocation7 + $0x5] sm:$0x1] %vm40, %v65
    %s67 = sadd.s32 %s36, 6
    %s68 = sld [smem:[#allocation3 + %s67]]
    %s69 = scalar_lea.vmem [#allocation4], %s68
    %v70 = vld [vmem:[%s69] sm:$0x1]
    %71 = vst.msk [vmem:[#allocation7 + $0x6] sm:$0x1] %vm40, %v70
    %s72 = sadd.s32 %s36, 7
    %s73 = sld [smem:[#allocation3 + %s72]]
    %s74 = scalar_lea.vmem [#allocation4], %s73
    %v75 = vld [vmem:[%s74] sm:$0x1]
    %76 = vst.msk [vmem:[#allocation7 + $0x7] sm:$0x1] %vm40, %v75
    %s77 = sadd.s32 %s36, 8
    %s78 = sld [smem:[#allocation3 + %s77]]
    %s79 = scalar_lea.vmem [#allocation4], %s78
    %v80 = vld [vmem:[%s79] sm:$0x1]
    %81 = vst.msk [vmem:[#allocation7 + $0x8] sm:$0x1] %vm40, %v80
    %s82 = sadd.s32 %s36, 9
    %s83 = sld [smem:[#allocation3 + %s82]]
    %s84 = scalar_lea.vmem [#allocation4], %s83
    %v85 = vld [vmem:[%s84] sm:$0x1]
    %86 = vst.msk [vmem:[#allocation7 + $0x9] sm:$0x1] %vm40, %v85
    %s87 = sadd.s32 %s36, 10
    %s88 = sld [smem:[#allocation3 + %s87]]
    %s89 = scalar_lea.vmem [#allocation4], %s88
    %v90 = vld [vmem:[%s89] sm:$0x1]
    %91 = vst.msk [vmem:[#allocation7 + $0xa] sm:$0x1] %vm40, %v90
    %s92 = sadd.s32 %s36, 11
    %s93 = sld [smem:[#allocation3 + %s92]]
    %s94 = scalar_lea.vmem [#allocation4], %s93
    %v95 = vld [vmem:[%s94] sm:$0x1]
    %96 = vst.msk [vmem:[#allocation7 + $0xb] sm:$0x1] %vm40, %v95
    %s97 = sadd.s32 %s36, 12
    %s98 = sld [smem:[#allocation3 + %s97]]
    %s99 = scalar_lea.vmem [#allocation4], %s98
    %v100 = vld [vmem:[%s99] sm:$0x1]
    %101 = vst.msk [vmem:[#allocation7 + $0xc] sm:$0x1] %vm40, %v100
    %s102 = sadd.s32 %s36, 13
    %s103 = sld [smem:[#allocation3 + %s102]]
    %s104 = scalar_lea.vmem [#allocation4], %s103
    %v105 = vld [vmem:[%s104] sm:$0x1]
    %106 = vst.msk [vmem:[#allocation7 + $0xd] sm:$0x1] %vm40, %v105
    %s107 = sadd.s32 %s36, 14
    %s108 = sld [smem:[#allocation3 + %s107]]
    %s109 = scalar_lea.vmem [#allocation4], %s108
    %v110 = vld [vmem:[%s109] sm:$0x1]
    %111 = vst.msk [vmem:[#allocation7 + $0xe] sm:$0x1] %vm40, %v110
    %s112 = sadd.s32 %s36, 15
    %s113 = sld [smem:[#allocation3 + %s112]]
    %s114 = scalar_lea.vmem [#allocation4], %s113
    %v115 = vld [vmem:[%s114] sm:$0x1]
    %116 = vst.msk [vmem:[#allocation7 + $0xf] sm:$0x1] %vm40, %v115
    %v117 = vld [vmem:[#allocation7] sm:$0xff]
    %v118 = vld [vmem:[#allocation7 + $0x8] sm:$0xff]
    %vm119 = vcmask 261120
    %v120 = vsel %vm119, %v117, -inf
    %121 = vmax.xlane.f32.xlu0 %v120
    %v122 = vpop.xlane.xlu0 %121
    %v123 = vsel %vm119, %v118, -inf
    %124 = vmax.xlane.f32.xlu0 %v123
    %v125 = vpop.xlane.xlu0 %124
    %v126 = vsub.f32 %v117, %v122
    %v127 = vsub.f32 %v118, %v125
    %v128 = vmul.f32 %v126, 1.442695
    %v129 = vpow.pop %v128
    %v130 = vmul.f32 %v127, 1.442695
    %v131 = vpow.pop %v130
    %v132 = vsel %vm119, %v129, 0.0
    %133 = vadd.xlane.f32.xlu0 %v132
    %v134 = vpop.xlane.xlu0 %133
    %v135 = vsel %vm119, %v131, 0.0
    %136 = vadd.xlane.f32.xlu0 %v135
    %v137 = vpop.xlane.xlu0 %136
    %v138 = vlog2.pop %v134
    %v139 = vmul.f32 %v138, 0.6931472
    %v140 = vlog2.pop %v137
    %v141 = vmul.f32 %v140, 0.6931472
    %v142 = vadd.f32 %v122, %v139
    %v143 = vadd.f32 %v125, %v141
    %v144 = vlaneseq
    %v145 = vand.u32 %v144, 127
    %v146 = vld [vmem:[%s1] sm:$0xff]
    %v147 = vld [vmem:[%s1 + $0x8] sm:$0xff]
    %148 = vset.pattern.permute.xlu0 0
    %149 = vperm.xlu0 %148, %v146
    %v150 = vpop.permute.xlu0 %149
    %151 = vset.pattern.permute.xlu0 0
    %152 = vperm.xlu0 %151, %v147
    %v153 = vpop.permute.xlu0 %152
    %vm154 = vcmp.eq.s32.totalorder %v145, %v150
    %vm155 = vcmp.eq.s32.totalorder %v145, %v153
    %v156 = vsel %vm154, %v117, 0.0
    %v157 = vsel %vm155, %v118, 0.0
    %v158 = vsel %vm119, %v156, 0.0
    %159 = vadd.xlane.f32.xlu0 %v158
    %v160 = vpop.xlane.xlu0 %159
    %v161 = vsel %vm119, %v157, 0.0
    %162 = vadd.xlane.f32.xlu0 %v161
    %v163 = vpop.xlane.xlu0 %162
    %v164 = vlaneseq
    %v165 = vshrl.u32 %v164, 7
    %v166 = vadd.s32 %v165, 8
    %v167 = vstv %s36
    %v168 = vadd.s32 %v167, %v165
    %v169 = vadd.s32 %v167, %v166
    %vm170 = vcmp.lt.s32.totalorder %v168, 16
    %vm171 = vcmp.lt.s32.totalorder %v169, 16
    %v172 = vsub.f32 %v142, %v160
    %v173 = vsub.f32 %v143, %v163
    %v174 = vsel %vm170, %v172, 0.0
    %v175 = vsel %vm171, %v173, 0.0
    %p176 = scmp.eq.s32.totalorder 0, 0
    // Predicated region
    $region14: #{tpu_custom_call.1} parent=1 // pred_check
      %p177 = pneg %p176
    $region15: #{tpu_custom_call.1} parent=1 // pred_check_branch
      %179 = sbr.rel (%p177) target = $region17
    $region16: #{tpu_custom_call.1} parent=1 // pred_region
      %vm180 = vcmask 0
      %181 = vst.msk [vmem:[#allocation8] sm:$0x1] %vm180, 0.0
    $region17: #{tpu_custom_call.1} parent=1 // pred_fallthru
      _
    %v182 = vld [vmem:[#allocation8] sm:$0x1]
    %vm183 = vcmask 7168
    %v184 = vsel %vm183, %v174, 0.0
    %v185 = vsel %vm183, %v175, 0.0
    %v186 = vadd.f32 %v184, %v185
    %187 = vadd.xlane.f32.xlu0 %v186
    %v188 = vpop.xlane.xlu0 %187
    %v189 = vrot.slane %v188, 4
    %v190 = vadd.f32 %v188, %v189
    %v191 = vrot.slane %v190, 2
    %v192 = vadd.f32 %v190, %v191
    %v193 = vrot.slane %v192, 1
    %v194 = vadd.f32 %v192, %v193
    %s195 = vtos %v194
    %v196 = vstv %s195
    %v197 = vadd.f32 %v182, %v196
    %vm198 = vcmask 0
    %199 = vst.msk [vmem:[#allocation8] sm:$0x1] %vm198, %v197
    // Predicated region
    $region18: #{tpu_custom_call.1} parent=1 // pred_check
      %p200 = pneg %p176
    $region19: #{tpu_custom_call.1} parent=1 // pred_check_branch
      %202 = sbr.rel (%p200) target = $region21
    $region20: #{tpu_custom_call.1} parent=1 // pred_region
      %v203 = vld [vmem:[#allocation8] sm:$0x1]
      %v204 = vmul.f32 %v203, 0.0625
      %205 = vst.msk [vmem:[#allocation8] sm:$0x1] %vm198, %v204
    $region21: #{tpu_custom_call.1} parent=1 // pred_fallthru
      _
    // Predicated region
    $region22: #{tpu_custom_call.1} parent=1 // pred_check
      _
    $region23: #{tpu_custom_call.1} parent=1 // pred_check_branch
      %207 = sbr.rel (0) target = $region25
    $region24: #{tpu_custom_call.1} parent=1 // pred_region
      %s209 = ssub.s32 256, 256
      %210 = vsyncadd [#allocation6], %s209
      %s211 = sshll.u32 [#allocation7], 4
      %s212 = int_to_ptr.vmem [resolvable:$true] %s211
      %217 = dma.vmem_to_hbm [thread:$0]  %s212, 256, %s3, [#allocation6], 128, 128, 8
    $region25: #{tpu_custom_call.1} parent=1 // pred_fallthru
      _
    // Predicated region
    $region26: #{tpu_custom_call.1} parent=1 // pred_check
      _
    $region27: #{tpu_custom_call.1} parent=1 // pred_check_branch
      %219 = sbr.rel (0) target = $region29
    $region28: #{tpu_custom_call.1} parent=1 // pred_region
      %s221 = ssub.s32 16, 16
      %222 = vsyncadd [#allocation9], %s221
      %s224 = sshll.u32 [#allocation8], 4
      %s225 = int_to_ptr.vmem [resolvable:$true] %s224
      %227 = dma.vmem_to_hbm [thread:$0]  %s225, 16, %s4, [#allocation9]
    $region29: #{tpu_custom_call.1} parent=1 // pred_fallthru
      _
    // Predicated region
    $region30: #{tpu_custom_call.1} parent=1 // pred_check
      _
    $region31: #{tpu_custom_call.1} parent=1 // pred_check_branch
      %229 = sbr.rel (0) target = $region33
    $region32: #{tpu_custom_call.1} parent=1 // pred_region
      %230 = dma.done [#allocation6], 256
    $region33: #{tpu_custom_call.1} parent=1 // pred_fallthru
      _
    // Predicated region
    $region34: #{tpu_custom_call.1} parent=1 // pred_check
      _
    $region35: #{tpu_custom_call.1} parent=1 // pred_check_branch
      %232 = sbr.rel (0) target = $region37
    $region36: #{tpu_custom_call.1} parent=1 // pred_region
      %233 = dma.done [#allocation9], 16
    $region37: #{tpu_custom_call.1} parent=1 // pred_fallthru
      _
    %234 = vsyncpa [#allocation5], 1
    %235 = vsyncpa [#allocation6], 1
    %236 = vsyncpa [#allocation9], 1

</llo_original>
